<compile_context>
chip_gen: v7x
topology: tpu7x:2x2x1
jax: 0.10.0
libtpu: 0.0.40
codegen_flags: <defaults>
</compile_context>

<pallas_src>
import jax
import jax.numpy as jnp
from jax.experimental import pallas as pl
from jax.experimental.pallas import tpu as pltpu

IN_F, HID, OUT_F = 8, 16, 8


def mlp_kernel(x_ref, p1_ref, p2_ref, o_ref):
    # p1_ref: (IN_F + 1, HID)   rows [0, IN_F) = W1,  row IN_F = b1
    # p2_ref: (HID + 1, OUT_F)  rows [0, HID)  = W2,  row HID  = b2
    x = x_ref[...]                                  # (B, IN_F), already f32
    w1 = p1_ref[:IN_F, :]                           # (IN_F, HID)
    b1 = p1_ref[IN_F:IN_F + 1, :]                   # (1, HID)
    w2 = p2_ref[:HID, :]                            # (HID, OUT_F)
    b2 = p2_ref[HID:HID + 1, :]                     # (1, OUT_F)

    # Linear(8, 16) on the VPU: broadcast-multiply + sublane reduce
    # (avoids padding a (1,8)x(8,16) problem to a full MXU systolic tile).
    v1 = jnp.sum(x[:, :, None] * w1[None, :, :], axis=1) + b1   # (B, HID)

    # v2 = sigmoid(v1); v3 = v1 * v2  (sigmoid rides the EUP slot)
    v3 = v1 * jax.nn.sigmoid(v1)

    # Linear(16, 8) on the VPU.
    v4 = jnp.sum(v3[:, :, None] * w2[None, :, :], axis=1) + b2  # (B, OUT_F)

    o_ref[...] = v4.astype(o_ref.dtype)


def mlp_forward(x, w1, b1, w2, b2):
    batch, in_f = x.shape
    hid = w1.shape[1]
    out_f = w2.shape[1]

    # Pack each layer's weight + bias into one contiguous operand
    # -> 3 input DMAs instead of 5 tiny ones.
    p1 = jnp.concatenate([w1, b1.reshape(1, hid)], axis=0)      # (in_f+1, hid)
    p2 = jnp.concatenate([w2, b2.reshape(1, out_f)], axis=0)    # (hid+1, out_f)

    # No grid: whole (tiny) arrays live in VMEM for the single invocation.
    # TODO(synk): if batch grows, tile the batch axis (grid=(cdiv(B, BM),),
    # weights on constant index maps, "parallel" semantics for v7x's 2 TCs)
    # and pad/reshape the output to a lane-dense (multiple-of-128) last dim.
    return pl.pallas_call(
        mlp_kernel,
        out_shape=jax.ShapeDtypeStruct((batch, out_f), x.dtype),
        in_specs=[
            pl.BlockSpec(memory_space=pltpu.MemorySpace.VMEM),
            pl.BlockSpec(memory_space=pltpu.MemorySpace.VMEM),
            pl.BlockSpec(memory_space=pltpu.MemorySpace.VMEM),
        ],
        out_specs=pl.BlockSpec(memory_space=pltpu.MemorySpace.VMEM),
    )(x, p1, p2)


def reference(x, w1, b1, w2, b2):
    v1 = x @ w1 + b1
    v3 = v1 * jax.nn.sigmoid(v1)
    return v3 @ w2 + b2


if __name__ == "__main__":
    key = jax.random.PRNGKey(0)
    kx, k1, k2, k3, k4 = jax.random.split(key, 5)

    batch, in_f, hid, out_f = 1, IN_F, HID, OUT_F

    x = jax.random.normal(kx, (batch, in_f), dtype=jnp.float32)

    # Deterministic parameter init mimicking nn.Linear's
    # uniform(-1/sqrt(fan_in), 1/sqrt(fan_in)).
    bound1 = 1.0 / jnp.sqrt(in_f)
    w1 = jax.random.uniform(k1, (in_f, hid), minval=-bound1, maxval=bound1,
                            dtype=jnp.float32)
    b1 = jax.random.uniform(k2, (1, hid), minval=-bound1, maxval=bound1,
                            dtype=jnp.float32)

    bound2 = 1.0 / jnp.sqrt(hid)
    w2 = jax.random.uniform(k3, (hid, out_f), minval=-bound2, maxval=bound2,
                            dtype=jnp.float32)
    b2 = jax.random.uniform(k4, (1, out_f), minval=-bound2, maxval=bound2,
                            dtype=jnp.float32)

    out = mlp_forward(x, w1, b1, w2, b2)
    out = jax.block_until_ready(out)

    ref = reference(x, w1, b1, w2, b2)
    assert out.shape == (batch, out_f)
    assert jnp.allclose(out, ref, atol=1e-5, rtol=1e-5), "mismatch vs reference"

    print("KERNEL_OK")
</pallas_src>

<mosaic_0001>
module attributes {stable_mosaic.version = 11 : i64} {
  func.func @mlp_kernel(%arg0: memref<1x8xf32, #tpu.memory_space<vmem>>, %arg1: memref<9x16xf32, #tpu.memory_space<vmem>>, %arg2: memref<17x8xf32, #tpu.memory_space<vmem>>, %arg3: memref<1x8xf32, #tpu.memory_space<vmem>>) attributes {dimension_semantics = [], scalar_prefetch = 0 : i64, scratch_operands = 0 : i64, tpu.core_type = #tpu.core_type<tc>} {
    %c0 = arith.constant 0 : index
    %c0_0 = arith.constant 0 : index
    %0 = vector.load %arg0[%c0, %c0_0] : memref<1x8xf32, #tpu.memory_space<vmem>>, vector<1x8xf32>
    %c0_1 = arith.constant 0 : index
    %c0_2 = arith.constant 0 : index
    %1 = vector.load %arg1[%c0_1, %c0_2] : memref<9x16xf32, #tpu.memory_space<vmem>>, vector<8x16xf32>
    %c8 = arith.constant 8 : index
    %c0_3 = arith.constant 0 : index
    %2 = vector.load %arg1[%c8, %c0_3] : memref<9x16xf32, #tpu.memory_space<vmem>>, vector<1x16xf32>
    %c0_4 = arith.constant 0 : index
    %c0_5 = arith.constant 0 : index
    %3 = vector.load %arg2[%c0_4, %c0_5] : memref<17x8xf32, #tpu.memory_space<vmem>>, vector<16x8xf32>
    %c16 = arith.constant 16 : index
    %c0_6 = arith.constant 0 : index
    %4 = vector.load %arg2[%c16, %c0_6] : memref<17x8xf32, #tpu.memory_space<vmem>>, vector<1x8xf32>
    %5 = vector.shape_cast %0 : vector<1x8xf32> to vector<1x8x1xf32>
    %6 = vector.shape_cast %1 : vector<8x16xf32> to vector<1x8x16xf32>
    %7 = vector.broadcast %5 : vector<1x8x1xf32> to vector<1x8x16xf32>
    %8 = arith.mulf %7, %6 : vector<1x8x16xf32>
    %cst = arith.constant dense<0.000000e+00> : vector<1x16xf32>
    %9 = vector.multi_reduction <add>, %8, %cst [1] : vector<1x8x16xf32> to vector<1x16xf32>
    %10 = arith.addf %9, %2 : vector<1x16xf32>
    %11 = arith.negf %10 : vector<1x16xf32>
    %12 = math.exp %11 : vector<1x16xf32>
    %cst_7 = arith.constant 1.000000e+00 : f32
    %13 = vector.broadcast %cst_7 : f32 to vector<1x16xf32>
    %14 = arith.addf %13, %12 : vector<1x16xf32>
    %15 = arith.divf %13, %14 : vector<1x16xf32>
    %16 = arith.mulf %10, %15 : vector<1x16xf32>
    %17 = vector.shape_cast %16 : vector<1x16xf32> to vector<1x16x1xf32>
    %18 = vector.shape_cast %3 : vector<16x8xf32> to vector<1x16x8xf32>
    %19 = vector.broadcast %17 : vector<1x16x1xf32> to vector<1x16x8xf32>
    %20 = arith.mulf %19, %18 : vector<1x16x8xf32>
    %cst_8 = arith.constant dense<0.000000e+00> : vector<1x8xf32>
    %21 = vector.multi_reduction <add>, %20, %cst_8 [1] : vector<1x16x8xf32> to vector<1x8xf32>
    %22 = arith.addf %21, %4 : vector<1x8xf32>
    %c0_9 = arith.constant 0 : index
    %c0_10 = arith.constant 0 : index
    %23 = vector.load %arg3[%c0_9, %c0_10] : memref<1x8xf32, #tpu.memory_space<vmem>>, vector<1x8xf32>
    tpu.vector_store %arg3[%c0_9, %c0_10], %22 {strides = array<i32>} : memref<1x8xf32, #tpu.memory_space<vmem>>, vector<1x8xf32>,
    return
  }
}

</mosaic_0001>

<llo_original>
// kernel: tpu_custom_call.1
$region0: #{tpu_custom_call.1}
  #allocation0 [shape = 'u32[]', space=smem, size = 0x4, offset = 0x4, fixed_abs, tag = 'smem constant byte address 0x4 - core index']
  #allocation1 [shape = 'u32[144,128]{1,0:T(1,128)}', space=vmem, size = 0x12000, scoped, tag = 'internal scratch']
  %s0 = inlined_call_operand.vmem [shape: f32[1,8], index: 0, kind: input, shape index: {}]
  %s1 = inlined_call_operand.vmem [shape: f32[9,16], index: 1, kind: input, shape index: {}]
  %s2 = inlined_call_operand.vmem [shape: f32[17,8], index: 2, kind: input, shape index: {}]
  %s3 = inlined_call_operand.hbm [shape: f32[1,8], index: 3, kind: output, shape index: {}]
  %s4 = sld [smem:[#allocation0]]
  $region22: #{tpu_custom_call.1} parent=0
    _
  %s6 = ssub.s32 1, %s4
  %s7 = scalar_select 0, %s6, %s4
  $region1: #{tpu_custom_call.1} parent=0
    #allocation2 [shape = 'u8[512]{0}', space=vmem, size = 0x400, scoped, tag = 'output window, operand 0, single buffered']
    #allocation3 [shape = 's32[1]{0}', space=sflag, size = 0x4, scoped, tag = 'scoped memory for tpu_custom_call.1']
    %8 = vsyncpa [#allocation3], 0
    // Predicated region
    $region2: #{tpu_custom_call.1} parent=1 // pred_check
      _
    $region3: #{tpu_custom_call.1} parent=1 // pred_check_branch
      %10 = sbr.rel (0) target = $region5
    $region4: #{tpu_custom_call.1} parent=1 // pred_region
      _
    $region5: #{tpu_custom_call.1} parent=1 // pred_fallthru
      _
    // Predicated region
    $region6: #{tpu_custom_call.1} parent=1 // pred_check
      _
    $region7: #{tpu_custom_call.1} parent=1 // pred_check_branch
      %12 = sbr.rel (0) target = $region9
    $region8: #{tpu_custom_call.1} parent=1 // pred_region
      _
    $region9: #{tpu_custom_call.1} parent=1 // pred_fallthru
      _
    // Predicated region
    $region10: #{tpu_custom_call.1} parent=1 // pred_check
      _
    $region11: #{tpu_custom_call.1} parent=1 // pred_check_branch
      %14 = sbr.rel (0) target = $region13
    $region12: #{tpu_custom_call.1} parent=1 // pred_region
      _
    $region13: #{tpu_custom_call.1} parent=1 // pred_fallthru
      _
    %v15 = vld [vmem:[%s0] sm:$0x1]
    %v16 = vld [vmem:[%s1] sm:$0xff]
    %v17 = vld [vmem:[%s1 + $0x8] sm:$0x1]
    %v18 = vld [vmem:[%s2] sm:$0xff]
    %v19 = vld [vmem:[%s2 + $0x8] sm:$0xff]
    %v20 = vld [vmem:[%s2 + $0x10] sm:$0x1]
    %v21 = vlaneseq
    %v22 = vshrl.u32 %v21, 7
    %v23 = vsub.s32 0, %v22
    %v24 = vrot.slane %v15, %v23
    %26 = vbcast.lane.b32.xlu0 %v24, 256
    %v27 = vpop.permute.xlu0 %26
    %v28 = vmul.f32 %v27, %v16
    %vm29 = vcmask 130048
    %v30 = vsel %vm29, %v28, 0.0
    %v31 = vrot.slane %v30, 4
    %v32 = vadd.f32 %v30, %v31
    %v33 = vrot.slane %v32, 2
    %v34 = vadd.f32 %v32, %v33
    %v35 = vrot.slane %v34, 1
    %v36 = vadd.f32 %v34, %v35
    %v37 = vadd.f32 %v36, %v17
    %v38 = vxor.u32 %v37, 2147483648
    %v39 = vmul.f32 %v38, 1.442695
    %v40 = vpow.pop %v39
    %v41 = vadd.f32 %v40, 1.0
    %v42 = vrcp.pop %v41
    %v43 = vmul.f32 1.0, %v42
    %v44 = vmul.f32 %v37, %v43
    %v45 = vlaneseq
    %v46 = vshrl.u32 %v45, 7
    %v47 = vsub.s32 0, %v46
    %v48 = vrot.slane %v44, %v47
    %50 = vbcast.lane.b32.xlu0 %v48, 256
    %v51 = vpop.permute.xlu0 %50
    %s53 = sor.u32 256, 8
    %54 = vbcast.lane.b32.xlu0 %v48, %s53
    %v55 = vpop.permute.xlu0 %54
    %v56 = vmul.f32 %v51, %v18
    %v57 = vmul.f32 %v55, %v19
    %vm58 = vcmask 64512
    %v59 = vsel %vm58, %v56, 0.0
    %v60 = vsel %vm58, %v57, 0.0
    %v61 = vadd.f32 %v59, %v60
    %v62 = vrot.slane %v61, 4
    %v63 = vadd.f32 %v61, %v62
    %v64 = vrot.slane %v63, 2
    %v65 = vadd.f32 %v63, %v64
    %v66 = vrot.slane %v65, 1
    %v67 = vadd.f32 %v65, %v66
    %v68 = vadd.f32 %v67, %v20
    %vm69 = vcmask 57344
    %70 = vst.msk [vmem:[#allocation2] sm:$0x1] %vm69, %v68
    // Predicated region
    $region14: #{tpu_custom_call.1} parent=1 // pred_check
      _
    $region15: #{tpu_custom_call.1} parent=1 // pred_check_branch
      %72 = sbr.rel (0) target = $region17
    $region16: #{tpu_custom_call.1} parent=1 // pred_region
      %s74 = ssub.s32 16, 16
      %75 = vsyncadd [#allocation3], %s74
      %s77 = sshll.u32 [#allocation2], 4
      %s78 = int_to_ptr.vmem [resolvable:$true] %s77
      %80 = dma.vmem_to_hbm [thread:$0]  %s78, 16, %s3, [#allocation3]
    $region17: #{tpu_custom_call.1} parent=1 // pred_fallthru
      _
    // Predicated region
    $region18: #{tpu_custom_call.1} parent=1 // pred_check
      _
    $region19: #{tpu_custom_call.1} parent=1 // pred_check_branch
      %82 = sbr.rel (0) target = $region21
    $region20: #{tpu_custom_call.1} parent=1 // pred_region
      %83 = dma.done [#allocation3], 16
    $region21: #{tpu_custom_call.1} parent=1 // pred_fallthru
      _
    %84 = vsyncpa [#allocation3], 1

</llo_original>
